<compile_context>
chip_gen: v7x
topology: tpu7x:2x2x1
jax: 0.10.0
libtpu: 0.0.40
codegen_flags: <defaults>
</compile_context>

<pallas_src>
import jax
import jax.numpy as jnp
from jax import lax
from jax.experimental import pallas as pl
from jax.experimental.pallas import tpu as pltpu


def _round_up(x, m):
    return ((x + m - 1) // m) * m


def _make_vq_kernel(l_true, tl, has_pad_rows, matmul_dtype):
    def kernel(x_ref, e_ref, e2_ref, dist_ref, idx_ref, quant_ref, encsum_ref, sqerr_ref):
        l_blk = pl.program_id(1)

        # Init the per-batch reduction accumulators at the start of each L sweep.
        @pl.when(l_blk == 0)
        def _init():
            encsum_ref[...] = jnp.zeros_like(encsum_ref)
            sqerr_ref[...] = jnp.zeros_like(sqerr_ref)

        # x tile arrives in the original NCL layout (D, TL); transpose in VMEM.
        x_dl = x_ref[0]                                   # (D, TL) f32
        x = x_dl.T                                        # (TL, D) f32
        e = e_ref[...]                                    # (Kp, D) f32, VMEM-resident
        e2 = e2_ref[...]                                  # (1, Kp) f32, pad cols pre-biased +1e30

        # distances = ||x||^2 + ||e||^2 - 2 x e^T   (MXU matmul, f32 accumulation)
        x2 = jnp.sum(x * x, axis=1, keepdims=True)        # (TL, 1)
        xe = lax.dot_general(x.astype(matmul_dtype), e.astype(matmul_dtype),
                             (((1,), (1,)), ((), ())),
                             preferred_element_type=jnp.float32)   # (TL, Kp)
        dist = x2 + e2 - 2.0 * xe
        dist_ref[0] = dist

        # argmin over codebook axis (first occurrence on ties, like torch.argmin)
        kp = e.shape[0]
        min_d = jnp.min(dist, axis=1, keepdims=True)
        k_iota = lax.broadcasted_iota(jnp.int32, dist.shape, 1)
        idx = jnp.min(jnp.where(dist <= min_d, k_iota, kp), axis=1)   # (TL,)
        idx_ref[0] = idx[:, None].astype(jnp.int32)

        # one-hot encodings and quantization (kept f32: quantized rows are exact
        # codebook rows; pad codebook rows are all-zero so they contribute nothing)
        enc = (k_iota == idx[:, None]).astype(jnp.float32)            # (TL, Kp)
        quant = jnp.dot(enc, e, preferred_element_type=jnp.float32)   # (TL, D)
        quant_ref[0] = quant.T                                        # store in NCL layout

        # Fused reductions: codebook usage counts + sum((quant - x)^2), masking
        # any padded sequence positions so they don't corrupt loss / perplexity.
        if has_pad_rows:
            row = lax.broadcasted_iota(jnp.int32, (tl, 1), 0) + l_blk * tl
            valid = (row < l_true).astype(jnp.float32)                # (TL, 1)
            enc_v = enc * valid
            d2 = ((quant - x) ** 2) * valid
        else:
            enc_v = enc
            d2 = (quant - x) ** 2

        colsum = jnp.sum(enc_v, axis=0, keepdims=True)                # (1, Kp)
        encsum_ref[...] += colsum[None]                               # bcast -> (1, 8, Kp)
        sqerr_ref[...] += jnp.sum(d2)                                 # scalar bcast -> (1, 8, 128)

    return kernel


def vector_quantizer_ema_forward(inputs, embedding_weight, commitment_cost=0.25,
                                 matmul_dtype=jnp.float32):
    """Eval-mode forward of VectorQuantizerEMA.

    inputs: (B, D, L) float32 (PyTorch NCL layout), embedding_weight: (K, D) float32.
    Returns (loss, quantized(B,D,L), embedding_weight, perplexity,
             encodings(N,K), encoding_indices(N,1), distances(N,K)).
    Pass matmul_dtype=jnp.bfloat16 on v6e/v7x for faster MXU distance matmuls
    (validate argmin/distance tolerance before relying on it).
    """
    B, D, L = inputs.shape
    K = embedding_weight.shape[0]
    N = B * L

    # ---- layout / tiling decisions ------------------------------------------------
    Kp = _round_up(K, 128)               # lane-dense codebook axis
    TL = L if L <= 512 else 512          # <=512 rows/step fits v7x's 64 MiB VMEM with headroom
    Lp = _round_up(L, TL)
    has_pad_rows = (Lp != L)

    x = inputs.astype(jnp.float32)
    if has_pad_rows:
        x = jnp.pad(x, ((0, 0), (0, 0), (0, Lp - L)))

    e = embedding_weight.astype(jnp.float32)
    if Kp != K:
        e = jnp.concatenate([e, jnp.zeros((Kp - K, D), jnp.float32)], axis=0)
    # Hoisted out of the kernel: ||e||^2 computed once per call; pad columns get
    # +1e30 so a padded codebook row can never win the argmin.
    e2 = jnp.sum(e * e, axis=1)[None, :]                              # (1, Kp)
    if Kp != K:
        col = lax.broadcasted_iota(jnp.int32, (1, Kp), 1)
        e2 = jnp.where(col < K, e2, jnp.float32(1e30))

    grid = (B, Lp // TL)

    out_shape = (
        jax.ShapeDtypeStruct((B, Lp, Kp), jnp.float32),   # distances
        jax.ShapeDtypeStruct((B, Lp, 1), jnp.int32),      # encoding indices
        jax.ShapeDtypeStruct((B, D, Lp), jnp.float32),    # quantized (NCL layout)
        jax.ShapeDtypeStruct((B, 8, Kp), jnp.float32),    # per-batch codebook usage counts
        jax.ShapeDtypeStruct((B, 8, 128), jnp.float32),   # per-batch sum((quant - x)^2)
    )
    in_specs = [
        pl.BlockSpec((1, D, TL), lambda b, l: (b, 0, l)),   # x tile, original NCL layout
        pl.BlockSpec((Kp, D), lambda b, l: (0, 0)),         # codebook: VMEM-resident
        pl.BlockSpec((1, Kp), lambda b, l: (0, 0)),         # ||e||^2: VMEM-resident
    ]
    out_specs = [
        pl.BlockSpec((1, TL, Kp), lambda b, l: (b, l, 0)),
        pl.BlockSpec((1, TL, 1), lambda b, l: (b, l, 0)),
        pl.BlockSpec((1, D, TL), lambda b, l: (b, 0, l)),
        pl.BlockSpec((1, 8, Kp), lambda b, l: (b, 0, 0)),   # accumulator across L axis
        pl.BlockSpec((1, 8, 128), lambda b, l: (b, 0, 0)),  # accumulator across L axis
    ]

    # Rough per-step VMEM footprint (f32); raise the scoped limit only when needed,
    # capped well under v7x's 64 MiB physical VMEM.
    per_step_bytes = 4 * (2 * D * TL + TL * Kp + TL + Kp * D + Kp + 8 * Kp + 8 * 128)
    cp_kwargs = dict(dimension_semantics=("parallel", "arbitrary"))
    vmem_need = 3 * per_step_bytes + (4 << 20)
    if vmem_need > (16 << 20):
        cp_kwargs["vmem_limit_bytes"] = int(min(vmem_need, 48 << 20))

    cost = pl.CostEstimate(
        flops=int(4 * B * Lp * Kp * D + 8 * B * Lp * Kp),
        transcendentals=0,
        bytes_accessed=int(4 * (2 * B * D * Lp + Kp * D + Kp
                                + B * Lp * Kp + B * Lp + B * 8 * Kp + B * 8 * 128)),
    )

    dist_p, idx_p, quant_p, encsum, sqerr = pl.pallas_call(
        _make_vq_kernel(L, TL, has_pad_rows, matmul_dtype),
        grid=grid,
        in_specs=in_specs,
        out_specs=out_specs,
        out_shape=out_shape,
        compiler_params=pltpu.CompilerParams(**cp_kwargs),
        cost_estimate=cost,
    )(x, e, e2)

    # ---- cheap plain-JAX epilogue (reductions already fused in the kernel) ---------
    quant_ncl = quant_p[:, :, :L]                             # (B, D, L), exact codebook rows
    distances = dist_p[:, :L, :K].reshape(N, K)
    encoding_indices = idx_p[:, :L, :].reshape(N, 1)
    encodings = jax.nn.one_hot(encoding_indices[:, 0], K, dtype=jnp.float32)

    counts = jnp.sum(encsum[:, 0, :K], axis=0)                # (K,)
    avg_probs = counts / N
    perplexity = jnp.exp(-jnp.sum(avg_probs * jnp.log(avg_probs + 1e-10)))

    e_latent_loss = jnp.sum(sqerr[:, 0, 0]) / (N * D)
    loss = commitment_cost * e_latent_loss

    # Straight-through estimator, applied directly in the NCL layout (the module's
    # two permutes cancel for both forward value and gradient).
    inputs_f32 = inputs.astype(jnp.float32)
    quantized = inputs_f32 + lax.stop_gradient(quant_ncl - inputs_f32)

    # TODO(synk): training-mode EMA buffer updates (_ema_cluster_size, _ema_w,
    # embedding refresh) are stateful nn.Module side effects; eval-mode forward only.
    return (loss, quantized, embedding_weight, perplexity,
            encodings, encoding_indices, distances)


if __name__ == "__main__":
    B, D, L, K = 2, 32, 16, 64   # batch=2, embedding_dim=32, seq=16, num_embeddings=64
    key = jax.random.PRNGKey(0)
    k1, k2 = jax.random.split(key)
    x = jax.random.normal(k1, (B, D, L), dtype=jnp.float32)
    embedding_weight = jax.random.normal(k2, (K, D), dtype=jnp.float32)

    outs = vector_quantizer_ema_forward(x, embedding_weight)
    jax.block_until_ready(outs)
    print("KERNEL_OK")
</pallas_src>

<mosaic_0001>
module attributes {stable_mosaic.version = 11 : i64} {
  func.func @kernel(%arg0: i32, %arg1: i32, %arg2: memref<1x32x16xf32, #tpu.memory_space<vmem>>, %arg3: memref<128x32xf32, #tpu.memory_space<vmem>>, %arg4: memref<1x128xf32, #tpu.memory_space<vmem>>, %arg5: memref<1x16x128xf32, #tpu.memory_space<vmem>>, %arg6: memref<1x16x1xi32, #tpu.memory_space<vmem>>, %arg7: memref<1x32x16xf32, #tpu.memory_space<vmem>>, %arg8: memref<1x8x128xf32, #tpu.memory_space<vmem>>, %arg9: memref<1x8x128xf32, #tpu.memory_space<vmem>>) attributes {dimension_semantics = [#tpu.dimension_semantics<parallel>, #tpu.dimension_semantics<arbitrary>], iteration_bounds = array<i64: 2, 1>, scalar_prefetch = 0 : i64, scratch_operands = 0 : i64, tpu.core_type = #tpu.core_type<tc>, window_params = [{transform_indices = @transform_0, window_bounds = array<i64: 1, 32, 16>}, {pipeline_mode = #tpu.pipeline_mode<synchronous>, transform_indices = @transform_1, window_bounds = array<i64: 128, 32>}, {pipeline_mode = #tpu.pipeline_mode<synchronous>, transform_indices = @transform_2, window_bounds = array<i64: 1, 128>}, {transform_indices = @transform_3, window_bounds = array<i64: 1, 16, 128>}, {transform_indices = @transform_4, window_bounds = array<i64: 1, 16, 1>}, {transform_indices = @transform_5, window_bounds = array<i64: 1, 32, 16>}, {transform_indices = @transform_6, window_bounds = array<i64: 1, 8, 128>}, {transform_indices = @transform_7, window_bounds = array<i64: 1, 8, 128>}]} {
    %c0_i32 = arith.constant 0 : i32
    %0 = arith.cmpi eq, %arg1, %c0_i32 : i32
    %1 = arith.extui %0 : i1 to i32
    %c0_i32_0 = arith.constant 0 : i32
    %2 = arith.cmpi ne, %1, %c0_i32_0 : i32
    scf.if %2 {
      %cst_35 = arith.constant 0.000000e+00 : f32
      %60 = vector.broadcast %cst_35 : f32 to vector<1x8x128xf32>
      %c0_36 = arith.constant 0 : index
      %c0_37 = arith.constant 0 : index
      %c0_38 = arith.constant 0 : index
      %61 = vector.load %arg8[%c0_36, %c0_37, %c0_38] : memref<1x8x128xf32, #tpu.memory_space<vmem>>, vector<1x8x128xf32>
      tpu.vector_store %arg8[%c0_36, %c0_37, %c0_38], %60 {strides = array<i32>} : memref<1x8x128xf32, #tpu.memory_space<vmem>>, vector<1x8x128xf32>,
      %cst_39 = arith.constant 0.000000e+00 : f32
      %62 = vector.broadcast %cst_39 : f32 to vector<1x8x128xf32>
      %c0_40 = arith.constant 0 : index
      %c0_41 = arith.constant 0 : index
      %c0_42 = arith.constant 0 : index
      %63 = vector.load %arg9[%c0_40, %c0_41, %c0_42] : memref<1x8x128xf32, #tpu.memory_space<vmem>>, vector<1x8x128xf32>
      tpu.vector_store %arg9[%c0_40, %c0_41, %c0_42], %62 {strides = array<i32>} : memref<1x8x128xf32, #tpu.memory_space<vmem>>, vector<1x8x128xf32>,
    } else {
    }
    %c0 = arith.constant 0 : index
    %c0_1 = arith.constant 0 : index
    %c0_2 = arith.constant 0 : index
    %3 = vector.load %arg2[%c0, %c0_1, %c0_2] : memref<1x32x16xf32, #tpu.memory_space<vmem>>, vector<1x32x16xf32>
    %4 = vector.shape_cast %3 : vector<1x32x16xf32> to vector<32x16xf32>
    %5 = tpu.transpose %4, [1, 0] : vector<32x16xf32> -> vector<16x32xf32>
    %c0_3 = arith.constant 0 : index
    %c0_4 = arith.constant 0 : index
    %6 = vector.load %arg3[%c0_3, %c0_4] : memref<128x32xf32, #tpu.memory_space<vmem>>, vector<128x32xf32>
    %c0_5 = arith.constant 0 : index
    %c0_6 = arith.constant 0 : index
    %7 = vector.load %arg4[%c0_5, %c0_6] : memref<1x128xf32, #tpu.memory_space<vmem>>, vector<1x128xf32>
    %8 = arith.mulf %5, %5 : vector<16x32xf32>
    %cst = arith.constant dense<0.000000e+00> : vector<16xf32>
    %9 = vector.multi_reduction <add>, %8, %cst [1] : vector<16x32xf32> to vector<16xf32>
    %10 = vector.shape_cast %9 : vector<16xf32> to vector<16x1xf32>
    %cst_7 = arith.constant dense<0.000000e+00> : vector<16x128xf32>
    %11 = tpu.matmul %5, %6, %cst_7 {dimension_numbers = #tpu.dot_dimension_numbers<[1], [1], [0], [0], [0, 0, 1, 0], [], []>} : vector<16x32xf32>, vector<128x32xf32>, vector<16x128xf32> -> vector<16x128xf32>
    %12 = vector.broadcast %10 : vector<16x1xf32> to vector<16x128xf32>
    %13 = vector.broadcast %7 : vector<1x128xf32> to vector<16x128xf32>
    %14 = arith.addf %12, %13 : vector<16x128xf32>
    %cst_8 = arith.constant 2.000000e+00 : f32
    %15 = vector.broadcast %cst_8 : f32 to vector<16x128xf32>
    %16 = arith.mulf %15, %11 : vector<16x128xf32>
    %17 = arith.subf %14, %16 : vector<16x128xf32>
    %c0_9 = arith.constant 0 : index
    %c0_10 = arith.constant 0 : index
    %c0_11 = arith.constant 0 : index
    %18 = vector.load %arg5[%c0_9, %c0_10, %c0_11] : memref<1x16x128xf32, #tpu.memory_space<vmem>>, vector<1x16x128xf32>
    %19 = vector.shape_cast %18 : vector<1x16x128xf32> to vector<16x128xf32>
    %20 = vector.shape_cast %17 : vector<16x128xf32> to vector<1x16x128xf32>
    tpu.vector_store %arg5[%c0_9, %c0_10, %c0_11], %20 {strides = array<i32>} : memref<1x16x128xf32, #tpu.memory_space<vmem>>, vector<1x16x128xf32>,
    %cst_12 = arith.constant dense<0x7F800000> : vector<16xf32>
    %21 = vector.multi_reduction <minimumf>, %17, %cst_12 [1] : vector<16x128xf32> to vector<16xf32>
    %22 = vector.shape_cast %21 : vector<16xf32> to vector<16x1xf32>
    %23 = tpu.iota {dimensions = array<i32: 1>} : vector<16x128xi32>
    %24 = vector.broadcast %22 : vector<16x1xf32> to vector<16x128xf32>
    %25 = arith.cmpf ole, %17, %24 : vector<16x128xf32>
    %c128_i32 = arith.constant 128 : i32
    %26 = vector.broadcast %c128_i32 : i32 to vector<16x128xi32>
    %27 = arith.select %25, %23, %26 : vector<16x128xi1>, vector<16x128xi32>
    %cst_13 = arith.constant dense<2147483647> : vector<16xi32>
    %28 = vector.multi_reduction <minsi>, %27, %cst_13 [1] : vector<16x128xi32> to vector<16xi32>
    %29 = vector.shape_cast %28 : vector<16xi32> to vector<16x1xi32>
    %c0_14 = arith.constant 0 : index
    %c0_15 = arith.constant 0 : index
    %c0_16 = arith.constant 0 : index
    %30 = vector.load %arg6[%c0_14, %c0_15, %c0_16] : memref<1x16x1xi32, #tpu.memory_space<vmem>>, vector<1x16x1xi32>
    %31 = vector.shape_cast %30 : vector<1x16x1xi32> to vector<16x1xi32>
    %32 = vector.shape_cast %29 : vector<16x1xi32> to vector<1x16x1xi32>
    tpu.vector_store %arg6[%c0_14, %c0_15, %c0_16], %32 {strides = array<i32>} : memref<1x16x1xi32, #tpu.memory_space<vmem>>, vector<1x16x1xi32>,
    %33 = vector.shape_cast %28 : vector<16xi32> to vector<16x1xi32>
    %34 = vector.broadcast %33 : vector<16x1xi32> to vector<16x128xi32>
    %35 = arith.cmpi eq, %23, %34 : vector<16x128xi32>
    %36 = arith.extui %35 : vector<16x128xi1> to vector<16x128xi32>
    %37 = arith.sitofp %36 : vector<16x128xi32> to vector<16x128xf32>
    %cst_17 = arith.constant dense<0.000000e+00> : vector<16x32xf32>
    %38 = tpu.matmul %37, %6, %cst_17 {dimension_numbers = #tpu.dot_dimension_numbers<[1], [0], [0], [1], [0, 0, 1, 1], [], []>} : vector<16x128xf32>, vector<128x32xf32>, vector<16x32xf32> -> vector<16x32xf32>
    %39 = tpu.transpose %38, [1, 0] : vector<16x32xf32> -> vector<32x16xf32>
    %c0_18 = arith.constant 0 : index
    %c0_19 = arith.constant 0 : index
    %c0_20 = arith.constant 0 : index
    %40 = vector.load %arg7[%c0_18, %c0_19, %c0_20] : memref<1x32x16xf32, #tpu.memory_space<vmem>>, vector<1x32x16xf32>
    %41 = vector.shape_cast %40 : vector<1x32x16xf32> to vector<32x16xf32>
    %42 = vector.shape_cast %39 : vector<32x16xf32> to vector<1x32x16xf32>
    tpu.vector_store %arg7[%c0_18, %c0_19, %c0_20], %42 {strides = array<i32>} : memref<1x32x16xf32, #tpu.memory_space<vmem>>, vector<1x32x16xf32>,
    %43 = arith.subf %38, %5 : vector<16x32xf32>
    %44 = arith.mulf %43, %43 : vector<16x32xf32>
    %cst_21 = arith.constant dense<0.000000e+00> : vector<128xf32>
    %45 = vector.multi_reduction <add>, %37, %cst_21 [0] : vector<16x128xf32> to vector<128xf32>
    %46 = vector.shape_cast %45 : vector<128xf32> to vector<1x128xf32>
    %c0_22 = arith.constant 0 : index
    %c0_23 = arith.constant 0 : index
    %c0_24 = arith.constant 0 : index
    %47 = vector.load %arg8[%c0_22, %c0_23, %c0_24] : memref<1x8x128xf32, #tpu.memory_space<vmem>>, vector<1x8x128xf32>
    %48 = vector.shape_cast %46 : vector<1x128xf32> to vector<1x1x128xf32>
    %49 = vector.broadcast %48 : vector<1x1x128xf32> to vector<1x8x128xf32>
    %50 = arith.addf %47, %49 : vector<1x8x128xf32>
    %c0_25 = arith.constant 0 : index
    %c0_26 = arith.constant 0 : index
    %c0_27 = arith.constant 0 : index
    %51 = vector.load %arg8[%c0_25, %c0_26, %c0_27] : memref<1x8x128xf32, #tpu.memory_space<vmem>>, vector<1x8x128xf32>
    tpu.vector_store %arg8[%c0_25, %c0_26, %c0_27], %50 {strides = array<i32>} : memref<1x8x128xf32, #tpu.memory_space<vmem>>, vector<1x8x128xf32>,
    %c0_28 = arith.constant 0 : index
    %c0_29 = arith.constant 0 : index
    %c0_30 = arith.constant 0 : index
    %52 = vector.load %arg9[%c0_28, %c0_29, %c0_30] : memref<1x8x128xf32, #tpu.memory_space<vmem>>, vector<1x8x128xf32>
    %53 = vector.shape_cast %44 : vector<16x32xf32> to vector<1x16x32xf32>
    %cst_31 = arith.constant dense<0.000000e+00> : vector<1xf32>
    %54 = vector.multi_reduction <add>, %53, %cst_31 [1, 2] : vector<1x16x32xf32> to vector<1xf32>
    %55 = vector.shape_cast %54 : vector<1xf32> to vector<1x1x1xf32>
    %56 = vector.extract %55[0, 0, 0] : f32 from vector<1x1x1xf32>
    %57 = vector.broadcast %56 : f32 to vector<1x8x128xf32>
    %58 = arith.addf %52, %57 : vector<1x8x128xf32>
    %c0_32 = arith.constant 0 : index
    %c0_33 = arith.constant 0 : index
    %c0_34 = arith.constant 0 : index
    %59 = vector.load %arg9[%c0_32, %c0_33, %c0_34] : memref<1x8x128xf32, #tpu.memory_space<vmem>>, vector<1x8x128xf32>
    tpu.vector_store %arg9[%c0_32, %c0_33, %c0_34], %58 {strides = array<i32>} : memref<1x8x128xf32, #tpu.memory_space<vmem>>, vector<1x8x128xf32>,
    return
  }
  func.func @transform_0(%arg0: i32, %arg1: i32) -> (i32, i32, i32) {
    %c0_i32 = arith.constant 0 : i32
    %c0_i32_0 = arith.constant 0 : i32
    return %arg0, %c0_i32, %arg1 : i32, i32, i32
  }
  func.func @transform_1(%arg0: i32, %arg1: i32) -> (i32, i32) {
    %c0_i32 = arith.constant 0 : i32
    %c0_i32_0 = arith.constant 0 : i32
    %c0_i32_1 = arith.constant 0 : i32
    return %c0_i32, %c0_i32_0 : i32, i32
  }
  func.func @transform_2(%arg0: i32, %arg1: i32) -> (i32, i32) {
    %c0_i32 = arith.constant 0 : i32
    %c0_i32_0 = arith.constant 0 : i32
    %c0_i32_1 = arith.constant 0 : i32
    return %c0_i32, %c0_i32_0 : i32, i32
  }
  func.func @transform_3(%arg0: i32, %arg1: i32) -> (i32, i32, i32) {
    %c0_i32 = arith.constant 0 : i32
    %c0_i32_0 = arith.constant 0 : i32
    return %arg0, %arg1, %c0_i32 : i32, i32, i32
  }
  func.func @transform_4(%arg0: i32, %arg1: i32) -> (i32, i32, i32) {
    %c0_i32 = arith.constant 0 : i32
    %c0_i32_0 = arith.constant 0 : i32
    return %arg0, %arg1, %c0_i32 : i32, i32, i32
  }
  func.func @transform_5(%arg0: i32, %arg1: i32) -> (i32, i32, i32) {
    %c0_i32 = arith.constant 0 : i32
    %c0_i32_0 = arith.constant 0 : i32
    return %arg0, %c0_i32, %arg1 : i32, i32, i32
  }
  func.func @transform_6(%arg0: i32, %arg1: i32) -> (i32, i32, i32) {
    %c0_i32 = arith.constant 0 : i32
    %c0_i32_0 = arith.constant 0 : i32
    %c0_i32_1 = arith.constant 0 : i32
    return %arg0, %c0_i32, %c0_i32_0 : i32, i32, i32
  }
  func.func @transform_7(%arg0: i32, %arg1: i32) -> (i32, i32, i32) {
    %c0_i32 = arith.constant 0 : i32
    %c0_i32_0 = arith.constant 0 : i32
    %c0_i32_1 = arith.constant 0 : i32
    return %arg0, %c0_i32, %c0_i32_0 : i32, i32, i32
  }
}

</mosaic_0001>

<llo_original>
// kernel: tpu_custom_call.1
$region0: #{tpu_custom_call.1}
  #allocation0 [shape = 'u32[]', space=smem, size = 0x4, offset = 0x4, fixed_abs, tag = 'smem constant byte address 0x4 - core index']
  #allocation1 [shape = 'u32[144,128]{1,0:T(1,128)}', space=vmem, size = 0x12000, scoped, tag = 'internal scratch']
  %s0 = inlined_call_operand.vmem [shape: f32[2,32,16], index: 0, kind: input, shape index: {}]
  %s1 = inlined_call_operand.vmem [shape: f32[128,32], index: 1, kind: input, shape index: {}]
  %s2 = inlined_call_operand.vmem [shape: f32[1,128], index: 2, kind: input, shape index: {}]
  %s3 = inlined_call_operand.hbm [shape: f32[2,16,128], index: 3, kind: output, shape index: {0}]
  %s4 = inlined_call_operand.vmem [shape: s32[2,16,1], index: 4, kind: output, shape index: {1}]
  %s5 = inlined_call_operand.vmem [shape: f32[2,32,16], index: 5, kind: output, shape index: {2}]
  %s6 = inlined_call_operand.hbm [shape: f32[2,8,128], index: 6, kind: output, shape index: {3}]
  %s7 = inlined_call_operand.hbm [shape: f32[2,8,128], index: 7, kind: output, shape index: {4}]
  %8 = xla_tuple %s3, %s4, %s5, %s6, %s7
  %s9 = sld [smem:[#allocation0]]
  $region81: #{tpu_custom_call.1} parent=0
    _
  %s11 = ssub.s32 1, %s9
  %s12 = scalar_select 0, %s11, %s9
  $region1: #{tpu_custom_call.1} parent=0
    #allocation2 [shape = 'u8[16384]{0}', space=vmem, size = 0x4000, scoped, tag = 'output window, operand 0']
    #allocation3 [shape = 's32[2]{0}', space=sflag, size = 0x8, scoped, tag = 'scoped memory for tpu_custom_call.1']
    #allocation4 [shape = 'u8[8192]{0}', space=vmem, size = 0x2000, scoped, tag = 'output window, operand 3']
    #allocation5 [shape = 's32[2]{0}', space=sflag, size = 0x8, scoped, tag = 'scoped memory for tpu_custom_call.1']
    #allocation6 [shape = 'u8[8192]{0}', space=vmem, size = 0x2000, scoped, tag = 'output window, operand 4']
    %13 = vsyncpa [#allocation3], 0
    %s14 = scalar_lea.sflag [#allocation3], 1
    %15 = vsyncpa %s14, 0
    %16 = vsyncpa [#allocation5], 0
    %s17 = scalar_lea.sflag [#allocation5], 1
    %18 = vsyncpa %s17, 0
    loop: start=0, step=1, limit=4
    $region2: #{tpu_custom_call.1} parent=1 // loop_pre_header
      _
    $region3: #{tpu_custom_call.1} parent=1 // loop_header
      %s20 = sphi 0, %s24
      %p21 = scmp.ge.s32.totalorder %s20, 4
      %s27 = sphi 0, %s39
      %s28 = sphi 0, %s35
      %s29 = sphi 0, %s27
      %s30 = sphi 0, %s28
      %s31 = sphi 0, %s29
      %s32 = sphi 0, %s30
      %s44 = sphi 0, %s46
      %s47 = sphi 0, %s44
      %s48 = sphi 0, %s47
      %s64 = sphi 0, %s48
      %s68 = sphi 0, %s68
      %s70 = sphi 0, %s68
      %s71 = sphi 0, %s70
      %s85 = sphi 0, %s71
      %s89 = sphi 0, %s89
      %s91 = sphi 0, %s89
      %s92 = sphi 0, %s91
      %s106 = sphi 0, %s92
      %s114 = sphi 0, %s116
      %s117 = sphi 0, %s114
      %s118 = sphi 0, %s117
      %s134 = sphi 0, %s118
      %s142 = sphi 0, %s144
      %s145 = sphi 0, %s142
      %s146 = sphi 0, %s145
      %s162 = sphi 0, %s146
      %s170 = sphi 0, %s172
      %s173 = sphi 0, %s170
      %s174 = sphi 0, %s173
      %s190 = sphi 0, %s174
      %s196 = sphi 0, %s198
      %s199 = sphi 0, %s196
      %s200 = sphi 0, %s199
      %s216 = sphi 0, %s200
      %s222 = sphi 0, %s224
      %s225 = sphi 0, %s222
      %s226 = sphi 0, %s225
      %s242 = sphi 0, %s226
    $region4: #{tpu_custom_call.1} parent=1 // loop_header_branch
      %23 = sbr.rel (%p21) target = $region8
    $region5: #{tpu_custom_call.1} parent=1 // loop_body
      %s25 = ssub.s32 %s20, 1
      %s26 = ssub.s32 %s20, 2
      %s33 = sadd.s32 1, %s28
      %p34 = scmp.ge.s32.totalorder %s33, 1
      %s35 = scalar_select %p34, 0, %s33
      %s36 = sadd.s32 1, %s27
      %s37 = scalar_select %p34, %s36, %s27
      %p38 = scmp.ge.s32.totalorder %s37, 2
      %s39 = scalar_select %p38, 0, %s37
      %s40 = ssub.s32 %s27, %s39
      %s41 = ssub.s32 %s28, %s35
      %s42 = sor.u32 %s40, %s41
      %p43 = scmp.eq.s32.totalorder %s42, 0
      %s45 = sadd.s32 %s44, 1
      %s46 = scalar_select %p43, %s44, %s45
      %p49 = pneg %p43
      %p50 = scmp.eq.s32.totalorder %s20, 1
      %p51 = por %p49, %p50
      %p52 = scmp.ne.s32.totalorder %s44, %s47
      %p53 = scmp.eq.s32.totalorder %s20, 0
      %p54 = por %p52, %p53
      %p55 = scmp.ne.s32.totalorder %s44, %s47
      %p56 = scmp.eq.s32.totalorder %s25, 1
      %p57 = por %p55, %p56
      %p58 = scmp.ne.s32.totalorder %s47, %s48
      %p59 = scmp.eq.s32.totalorder %s25, 0
      %p60 = por %p58, %p59
      %p61 = scmp.ne.s32.totalorder %s47, %s48
      %p62 = scmp.eq.s32.totalorder %s26, 1
      %p63 = por %p61, %p62
      %p65 = scmp.ne.s32.totalorder %s48, %s64
      %p66 = scmp.eq.s32.totalorder %s26, 0
      %p67 = por %p65, %p66
      %s69 = sadd.s32 %s68, 1
      %p72 = scmp.eq.s32.totalorder %s20, 1
      %p73 = scmp.ne.s32.totalorder %s68, %s70
      %p74 = scmp.eq.s32.totalorder %s20, 0
      %p75 = por %p73, %p74
      %p76 = scmp.ne.s32.totalorder %s68, %s70
      %p77 = scmp.eq.s32.totalorder %s25, 1
      %p78 = por %p76, %p77
      %p79 = scmp.ne.s32.totalorder %s70, %s71
      %p80 = scmp.eq.s32.totalorder %s25, 0
      %p81 = por %p79, %p80
      %p82 = scmp.ne.s32.totalorder %s70, %s71
      %p83 = scmp.eq.s32.totalorder %s26, 1
      %p84 = por %p82, %p83
      %p86 = scmp.ne.s32.totalorder %s71, %s85
      %p87 = scmp.eq.s32.totalorder %s26, 0
      %p88 = por %p86, %p87
      %s90 = sadd.s32 %s89, 1
      %p93 = scmp.eq.s32.totalorder %s20, 1
      %p94 = scmp.ne.s32.totalorder %s89, %s91
      %p95 = scmp.eq.s32.totalorder %s20, 0
      %p96 = por %p94, %p95
      %p97 = scmp.ne.s32.totalorder %s89, %s91
      %p98 = scmp.eq.s32.totalorder %s25, 1
      %p99 = por %p97, %p98
      %p100 = scmp.ne.s32.totalorder %s91, %s92
      %p101 = scmp.eq.s32.totalorder %s25, 0
      %p102 = por %p100, %p101
      %p103 = scmp.ne.s32.totalorder %s91, %s92
      %p104 = scmp.eq.s32.totalorder %s26, 1
      %p105 = por %p103, %p104
      %p107 = scmp.ne.s32.totalorder %s92, %s106
      %p108 = scmp.eq.s32.totalorder %s26, 0
      %p109 = por %p107, %p108
      %s110 = ssub.s32 %s27, %s39
      %s111 = ssub.s32 %s28, %s35
      %s112 = sor.u32 %s110, %s111
      %p113 = scmp.eq.s32.totalorder %s112, 0
      %s115 = sadd.s32 %s114, 1
      %s116 = scalar_select %p113, %s114, %s115
      %p119 = pneg %p113
      %p120 = scmp.eq.s32.totalorder %s20, 1
      %p121 = por %p119, %p120
      %p122 = scmp.ne.s32.totalorder %s114, %s117
      %p123 = scmp.eq.s32.totalorder %s20, 0
      %p124 = por %p122, %p123
      %p125 = scmp.ne.s32.totalorder %s114, %s117
      %p126 = scmp.eq.s32.totalorder %s25, 1
      %p127 = por %p125, %p126
      %p128 = scmp.ne.s32.totalorder %s117, %s118
      %p129 = scmp.eq.s32.totalorder %s25, 0
      %p130 = por %p128, %p129
      %p131 = scmp.ne.s32.totalorder %s117, %s118
      %p132 = scmp.eq.s32.totalorder %s26, 1
      %p133 = por %p131, %p132
      %p135 = scmp.ne.s32.totalorder %s118, %s134
      %p136 = scmp.eq.s32.totalorder %s26, 0
      %p137 = por %p135, %p136
      %s138 = ssub.s32 %s27, %s39
      %s139 = ssub.s32 %s28, %s35
      %s140 = sor.u32 %s138, %s139
      %p141 = scmp.eq.s32.totalorder %s140, 0
      %s143 = sadd.s32 %s142, 1
      %s144 = scalar_select %p141, %s142, %s143
      %p147 = pneg %p141
      %p148 = scmp.eq.s32.totalorder %s20, 1
      %p149 = por %p147, %p148
      %p150 = scmp.ne.s32.totalorder %s142, %s145
      %p151 = scmp.eq.s32.totalorder %s20, 0
      %p152 = por %p150, %p151
      %p153 = scmp.ne.s32.totalorder %s142, %s145
      %p154 = scmp.eq.s32.totalorder %s25, 1
      %p155 = por %p153, %p154
      %p156 = scmp.ne.s32.totalorder %s145, %s146
      %p157 = scmp.eq.s32.totalorder %s25, 0
      %p158 = por %p156, %p157
      %p159 = scmp.ne.s32.totalorder %s145, %s146
      %p160 = scmp.eq.s32.totalorder %s26, 1
      %p161 = por %p159, %p160
      %p163 = scmp.ne.s32.totalorder %s146, %s162
      %p164 = scmp.eq.s32.totalorder %s26, 0
      %p165 = por %p163, %p164
      %s166 = ssub.s32 %s27, %s39
      %s167 = ssub.s32 %s28, %s35
      %s168 = sor.u32 %s166, %s167
      %p169 = scmp.eq.s32.totalorder %s168, 0
      %s171 = sadd.s32 %s170, 1
      %s172 = scalar_select %p169, %s170, %s171
      %p175 = pneg %p169
      %p176 = scmp.eq.s32.totalorder %s20, 1
      %p177 = por %p175, %p176
      %p178 = scmp.ne.s32.totalorder %s170, %s173
      %p179 = scmp.eq.s32.totalorder %s20, 0
      %p180 = por %p178, %p179
      %p181 = scmp.ne.s32.totalorder %s170, %s173
      %p182 = scmp.eq.s32.totalorder %s25, 1
      %p183 = por %p181, %p182
      %p184 = scmp.ne.s32.totalorder %s173, %s174
      %p185 = scmp.eq.s32.totalorder %s25, 0
      %p186 = por %p184, %p185
      %p187 = scmp.ne.s32.totalorder %s173, %s174
      %p188 = scmp.eq.s32.totalorder %s26, 1
      %p189 = por %p187, %p188
      %p191 = scmp.ne.s32.totalorder %s174, %s190
      %p192 = scmp.eq.s32.totalorder %s26, 0
      %p193 = por %p191, %p192
      %s194 = ssub.s32 %s27, %s39
      %p195 = scmp.eq.s32.totalorder %s194, 0
      %s197 = sadd.s32 %s196, 1
      %s198 = scalar_select %p195, %s196, %s197
      %p201 = pneg %p195
      %p202 = scmp.eq.s32.totalorder %s20, 1
      %p203 = por %p201, %p202
      %p204 = scmp.ne.s32.totalorder %s196, %s199
      %p205 = scmp.eq.s32.totalorder %s20, 0
      %p206 = por %p204, %p205
      %p207 = scmp.ne.s32.totalorder %s196, %s199
      %p208 = scmp.eq.s32.totalorder %s25, 1
      %p209 = por %p207, %p208
      %p210 = scmp.ne.s32.totalorder %s199, %s200
      %p211 = scmp.eq.s32.totalorder %s25, 0
      %p212 = por %p210, %p211
      %p213 = scmp.ne.s32.totalorder %s199, %s200
      %p214 = scmp.eq.s32.totalorder %s26, 1
      %p215 = por %p213, %p214
      %p217 = scmp.ne.s32.totalorder %s200, %s216
      %p218 = scmp.eq.s32.totalorder %s26, 0
      %p219 = por %p217, %p218
      %s220 = ssub.s32 %s27, %s39
      %p221 = scmp.eq.s32.totalorder %s220, 0
      %s223 = sadd.s32 %s222, 1
      %s224 = scalar_select %p221, %s222, %s223
      %p227 = pneg %p221
      %p228 = scmp.eq.s32.totalorder %s20, 1
      %p229 = por %p227, %p228
      %p230 = scmp.ne.s32.totalorder %s222, %s225
      %p231 = scmp.eq.s32.totalorder %s20, 0
      %p232 = por %p230, %p231
      %p233 = scmp.ne.s32.totalorder %s222, %s225
      %p234 = scmp.eq.s32.totalorder %s25, 1
      %p235 = por %p233, %p234
      %p236 = scmp.ne.s32.totalorder %s225, %s226
      %p237 = scmp.eq.s32.totalorder %s25, 0
      %p238 = por %p236, %p237
      %p239 = scmp.ne.s32.totalorder %s225, %s226
      %p240 = scmp.eq.s32.totalorder %s26, 1
      %p241 = por %p239, %p240
      %p243 = scmp.ne.s32.totalorder %s226, %s242
      %p244 = scmp.eq.s32.totalorder %s26, 0
      %p245 = por %p243, %p244
      %p246 = scmp.le.s32.totalorder 1, %s20
      %p247 = scmp.lt.s32.totalorder %s20, 3
      %p248 = pnand %p246, %p247
      %p249 = pneg %p248
      // Predicated region
      $region9: #{tpu_custom_call.1} parent=5 // pred_check
        _
      $region10: #{tpu_custom_call.1} parent=5 // pred_check_branch
        %251 = sbr.rel (%p248) target = $region12
      $region11: #{tpu_custom_call.1} parent=5 // pred_region
        %s252 = ssub.s32 %s20, 1
        // Predicated region
        $region13: #{tpu_custom_call.1} parent=11 // pred_check
          %p253 = pneg %p81
        $region14: #{tpu_custom_call.1} parent=11 // pred_check_branch
          %255 = sbr.rel (%p253) target = $region16
        $region15: #{tpu_custom_call.1} parent=11 // pred_region
          _
        $region16: #{tpu_custom_call.1} parent=11 // pred_fallthru
          _
        // Predicated region
        $region17: #{tpu_custom_call.1} parent=11 // pred_check
          %p256 = pneg %p102
        $region18: #{tpu_custom_call.1} parent=11 // pred_check_branch
          %258 = sbr.rel (%p256) target = $region20
        $region19: #{tpu_custom_call.1} parent=11 // pred_region
          _
        $region20: #{tpu_custom_call.1} parent=11 // pred_fallthru
          _
      $region12: #{tpu_custom_call.1} parent=5 // pred_fallthru
        _
      %p259 = scmp.lt.s32.totalorder %s20, 2
      // Predicated region
      $region21: #{tpu_custom_call.1} parent=5 // pred_check
        %p260 = pneg %p259
      $region22: #{tpu_custom_call.1} parent=5 // pred_check_branch
        %262 = sbr.rel (%p260) target = $region24
      $region23: #{tpu_custom_call.1} parent=5 // pred_region
        // Predicated region
        $region25: #{tpu_custom_call.1} parent=23 // pred_check
          %p263 = pneg %p54
        $region26: #{tpu_custom_call.1} parent=23 // pred_check_branch
          %265 = sbr.rel (%p263) target = $region28
        $region27: #{tpu_custom_call.1} parent=23 // pred_region
          %p266 = scmp.lt.s32.totalorder %s27, 1
          %s267 = scalar_select %p266, %s27, 1
          %p268 = scmp.lt.s32.totalorder %s28, 0
          %s269 = scalar_select %p268, %s28, 0
          %s270 = smul.addr %s267, 4
          %s271 = sadd.s32 %s269, %s270
          %s272 = smul.addr %s271, 8
          %s273 = scalar_lea.vmem %s0, %s272
        $region28: #{tpu_custom_call.1} parent=23 // pred_fallthru
          _
      $region24: #{tpu_custom_call.1} parent=5 // pred_fallthru
        _
      %p274 = scmp.le.s32.totalorder 1, %s20
      %p275 = scmp.lt.s32.totalorder %s20, 3
      %p276 = pnand %p274, %p275
      %p277 = pneg %p276
      // Predicated region
      $region29: #{tpu_custom_call.1} parent=5 // pred_check
        _
      $region30: #{tpu_custom_call.1} parent=5 // pred_check_branch
        %279 = sbr.rel (%p276) target = $region32
      $region31: #{tpu_custom_call.1} parent=5 // pred_region
        %s280 = ssub.s32 %s20, 1
        %p281 = scmp.lt.s32.totalorder %s29, 1
        %s282 = scalar_select %p281, %s29, 1
        %p283 = scmp.lt.s32.totalorder %s30, 0
        %s284 = scalar_select %p283, %s30, 0
        %s285 = smul.addr %s282, 4
        %s286 = sadd.s32 %s284, %s285
        %s287 = smul.addr %s286, 8
        %s288 = scalar_lea.vmem %s0, %s287
        %p289 = pneg %p60
        %p290 = pneg %p57
        %p291 = pneg %p81
        %p292 = pneg %p78
        %p293 = pneg %p102
        %p294 = pneg %p99
        %p295 = pneg %p130
        %p296 = pneg %p127
        %s297 = sand.u32 %s117, 1
        %s298 = scalar_lea.sflag [#allocation3], %s297
        %s299 = sand.u32 %s117, 1
        %s300 = smul.addr %s299, 16
        %s301 = scalar_lea.vmem [#allocation2], %s300
        %p302 = pneg %p158
        %p303 = pneg %p155
        %s304 = smul.u32 2, %s30
        %p305 = scmp.lt.s32.totalorder %s29, 1
        %s306 = scalar_select %p305, %s29, 1
        %p307 = scmp.lt.s32.totalorder %s304, 1
        %s308 = scalar_select %p307, %s304, 1
        %s309 = smul.addr %s306, 2
        %s310 = sadd.s32 %s308, %s309
        %s311 = smul.addr %s310, 8
        %s312 = scalar_lea.vmem %s4, %s311
        %p313 = pneg %p186
        %p314 = pneg %p183
        %p315 = scmp.lt.s32.totalorder %s29, 1
        %s316 = scalar_select %p315, %s29, 1
        %p317 = scmp.lt.s32.totalorder %s30, 0
        %s318 = scalar_select %p317, %s30, 0
        %s319 = smul.addr %s316, 4
        %s320 = sadd.s32 %s318, %s319
        %s321 = smul.addr %s320, 8
        %s322 = scalar_lea.vmem %s5, %s321
        %p323 = pneg %p212
        %p324 = pneg %p209
        %s325 = sand.u32 %s25, 1
        %s326 = scalar_lea.sflag [#allocation5], %s325
        %s327 = sand.u32 %s199, 1
        %s328 = smul.addr %s327, 8
        %s329 = scalar_lea.vmem [#allocation4], %s328
        %p330 = pneg %p238
        %p331 = pneg %p235
        %s332 = sand.u32 %s25, 1
        %s333 = scalar_lea.sflag [#allocation5], %s332
        %s334 = sand.u32 %s225, 1
        %s335 = smul.addr %s334, 8
        %s336 = scalar_lea.vmem [#allocation6], %s335
        %p337 = scmp.lt.s32.totalorder %s29, 1
        %s338 = scalar_select %p337, %s29, 1
        %p339 = scmp.lt.s32.totalorder %s30, 0
        %s340 = scalar_select %p339, %s30, 0
        %s341 = smul.addr %s338, 4
        %s342 = sadd.s32 %s340, %s341
        %s343 = smul.addr %s342, 8
        %s344 = scalar_lea.vmem %s0, %s343
        %s345 = smul.u32 2, %s30
        %s346 = smul.u32 2, %s30
        %p347 = scmp.lt.s32.totalorder %s29, 1
        %s348 = scalar_select %p347, %s29, 1
        %p349 = scmp.lt.s32.totalorder %s346, 1
        %s350 = scalar_select %p349, %s346, 1
        %s351 = smul.addr %s348, 2
        %s352 = sadd.s32 %s350, %s351
        %s353 = smul.addr %s352, 8
        %s354 = scalar_lea.vmem %s4, %s353
        %s355 = smul.u32 2, %s30
        %p356 = scmp.lt.s32.totalorder %s29, 1
        %s357 = scalar_select %p356, %s29, 1
        %p358 = scmp.lt.s32.totalorder %s30, 0
        %s359 = scalar_select %p358, %s30, 0
        %s360 = smul.addr %s357, 4
        %s361 = sadd.s32 %s359, %s360
        %s362 = smul.addr %s361, 8
        %s363 = scalar_lea.vmem %s5, %s362
        %p364 = scmp.eq.s32.totalorder %s30, 0
        // Predicated region
        $region33: #{tpu_custom_call.1} parent=31 // pred_check
          %p365 = pneg %p364
        $region34: #{tpu_custom_call.1} parent=31 // pred_check_branch
          %367 = sbr.rel (%p365) target = $region36
        $region35: #{tpu_custom_call.1} parent=31 // pred_region
          %368 = vst [vmem:[%s329] sm:$0xff] 0.0
          %369 = vst [vmem:[%s336] sm:$0xff] 0.0
        $region36: #{tpu_custom_call.1} parent=31 // pred_fallthru
          _
        %v370 = vld [vmem:[%s344] sm:$0xff]
        %v371 = vld [vmem:[%s344 + $0x8] sm:$0xff]
        %v372 = vld [vmem:[%s344 + $0x10] sm:$0xff]
        %v373 = vld [vmem:[%s344 + $0x18] sm:$0xff]
        %374 = vxpose.xlu0.b32.start [1/16] %v370, 128
        %375 = vxpose.xlu0.b32.cont [2/16] %v371, 128
        %376 = vxpose.xlu0.b32.cont [3/16] %v372, 128
        %377 = vxpose.xlu0.b32.cont [4/16] %v373, 128
        %378 = vxpose.xlu0.b32.cont [5/16] 0.0, 128
        %379 = vxpose.xlu0.b32.cont [6/16] 0.0, 128
        %380 = vxpose.xlu0.b32.cont [7/16] 0.0, 128
        %381 = vxpose.xlu0.b32.cont [8/16] 0.0, 128
        %382 = vxpose.xlu0.b32.cont [9/16] 0.0, 128
        %383 = vxpose.xlu0.b32.cont [10/16] 0.0, 128
        %384 = vxpose.xlu0.b32.cont [11/16] 0.0, 128
        %385 = vxpose.xlu0.b32.cont [12/16] 0.0, 128
        %386 = vxpose.xlu0.b32.cont [13/16] 0.0, 128
        %387 = vxpose.xlu0.b32.cont [14/16] 0.0, 128
        %388 = vxpose.xlu0.b32.cont [15/16] 0.0, 128
        %389 = vxpose.xlu0.b32.end [16/16] 0.0, 128
        %v390 = vpop.trf.xlu0
        %v391 = vpop.trf.xlu0
        %v392 = vpop.trf.xlu0
        %v393 = vpop.trf.xlu0
        %v394 = vpop.trf.xlu0
        %v395 = vpop.trf.xlu0
        %v396 = vpop.trf.xlu0
        %v397 = vpop.trf.xlu0
        %v398 = vpop.trf.xlu0
        %v399 = vpop.trf.xlu0
        %v400 = vpop.trf.xlu0
        %v401 = vpop.trf.xlu0
        %v402 = vpop.trf.xlu0
        %v403 = vpop.trf.xlu0
        %v404 = vpop.trf.xlu0
        %v405 = vpop.trf.xlu0
        %v406 = vld [vmem:[%s1] sm:$0xff]
        %v407 = vld [vmem:[%s1 + $0x8] sm:$0xff]
        %v408 = vld [vmem:[%s1 + $0x10] sm:$0xff]
        %v409 = vld [vmem:[%s1 + $0x18] sm:$0xff]
        %v410 = vld [vmem:[%s1 + $0x20] sm:$0xff]
        %v411 = vld [vmem:[%s1 + $0x28] sm:$0xff]
        %v412 = vld [vmem:[%s1 + $0x30] sm:$0xff]
        %v413 = vld [vmem:[%s1 + $0x38] sm:$0xff]
        %v414 = vld [vmem:[%s1 + $0x40] sm:$0xff]
        %v415 = vld [vmem:[%s1 + $0x48] sm:$0xff]
        %v416 = vld [vmem:[%s1 + $0x50] sm:$0xff]
        %v417 = vld [vmem:[%s1 + $0x58] sm:$0xff]
        %v418 = vld [vmem:[%s1 + $0x60] sm:$0xff]
        %v419 = vld [vmem:[%s1 + $0x68] sm:$0xff]
        %v420 = vld [vmem:[%s1 + $0x70] sm:$0xff]
        %v421 = vld [vmem:[%s1 + $0x78] sm:$0xff]
        %v422 = vld [vmem:[%s2] sm:$0x1]
        %v423 = vmul.f32 %v390, %v390
        %v424 = vmul.f32 %v391, %v391
        %vm425 = vcmask 261120
        %v426 = vsel %vm425, %v423, 0.0
        %427 = vadd.xlane.f32.xlu0 %v426
        %v428 = vpop.xlane.xlu0 %427
        %v429 = vsel %vm425, %v424, 0.0
        %430 = vadd.xlane.f32.xlu0 %v429
        %v431 = vpop.xlane.xlu0 %430
        %v433 = vsel %vm425, %v390, 0
        %v436 = vsel %vm425, %v391, 0
        %v439 = vsel %vm425, %v406, 0
        %v442 = vsel %vm425, %v407, 0
        %v445 = vsel %vm425, %v408, 0
        %v448 = vsel %vm425, %v409, 0
        %v451 = vsel %vm425, %v410, 0
        %v454 = vsel %vm425, %v411, 0
        %v457 = vsel %vm425, %v412, 0
        %v460 = vsel %vm425, %v413, 0
        %v463 = vsel %vm425, %v414, 0
        %v466 = vsel %vm425, %v415, 0
        %v469 = vsel %vm425, %v416, 0
        %v472 = vsel %vm425, %v417, 0
        %v475 = vsel %vm425, %v418, 0
        %v478 = vsel %vm425, %v419, 0
        %v481 = vsel %vm425, %v420, 0
        %v484 = vsel %vm425, %v421, 0
        %486 = vmatprep.subr.mxu0 0.0
        %487 = vmatpush1.xpose.msra.mxu0 %v439
        %488 = vmatprep.subr.mxu0 0.0
        %489 = vmatpush1.xpose.msra.mxu0 %v442
        %490 = vmatprep.subr.mxu0 0.0
        %491 = vmatpush1.xpose.msra.mxu0 %v445
        %492 = vmatprep.subr.mxu0 0.0
        %493 = vmatpush1.xpose.msra.mxu0 %v448
        %494 = vmatprep.subr.mxu0 0.0
        %495 = vmatpush1.xpose.msra.mxu0 %v451
        %496 = vmatprep.subr.mxu0 0.0
        %497 = vmatpush1.xpose.msra.mxu0 %v454
        %498 = vmatprep.subr.mxu0 0.0
        %499 = vmatpush1.xpose.msra.mxu0 %v457
        %500 = vmatprep.subr.mxu0 0.0
        %501 = vmatpush1.xpose.msra.mxu0 %v460
        %502 = vmatprep.subr.mxu0 0.0
        %503 = vmatpush1.xpose.msra.mxu0 %v463
        %504 = vmatprep.subr.mxu0 0.0
        %505 = vmatpush1.xpose.msra.mxu0 %v466
        %506 = vmatprep.subr.mxu0 0.0
        %507 = vmatpush1.xpose.msra.mxu0 %v469
        %508 = vmatprep.subr.mxu0 0.0
        %509 = vmatpush1.xpose.msra.mxu0 %v472
        %510 = vmatprep.subr.mxu0 0.0
        %511 = vmatpush1.xpose.msra.mxu0 %v475
        %512 = vmatprep.subr.mxu0 0.0
        %513 = vmatpush1.xpose.msra.mxu0 %v478
        %514 = vmatprep.subr.mxu0 0.0
        %515 = vmatpush1.xpose.msra.mxu0 %v481
        %516 = vmatprep.subr.mxu0 0.0
        %517 = vmatpush1.xpose.msra.mxu0 %v484
        %518 = vmatprep.subr.mxu0 0.0
        %519 = vmatpush1.xpose.msra.mxu0 0.0
        %520 = vmatprep.subr.mxu0 0.0
        %521 = vmatpush1.xpose.msra.mxu0 0.0
        %522 = vmatprep.subr.mxu0 0.0
        %523 = vmatpush1.xpose.msra.mxu0 0.0
        %524 = vmatprep.subr.mxu0 0.0
        %525 = vmatpush1.xpose.msra.mxu0 0.0
        %526 = vmatprep.subr.mxu0 0.0
        %527 = vmatpush1.xpose.msra.mxu0 0.0
        %528 = vmatprep.subr.mxu0 0.0
        %529 = vmatpush1.xpose.msra.mxu0 0.0
        %530 = vmatprep.subr.mxu0 0.0
        %531 = vmatpush1.xpose.msra.mxu0 0.0
        %532 = vmatprep.subr.mxu0 0.0
        %533 = vmatpush1.xpose.msra.mxu0 0.0
        %534 = vmatprep.subr.mxu0 0.0
        %535 = vmatpush1.xpose.msra.mxu0 0.0
        %536 = vmatprep.subr.mxu0 0.0
        %537 = vmatpush1.xpose.msra.mxu0 0.0
        %538 = vmatprep.subr.mxu0 0.0
        %539 = vmatpush1.xpose.msra.mxu0 0.0
        %540 = vmatprep.subr.mxu0 0.0
        %541 = vmatpush1.xpose.msra.mxu0 0.0
        %542 = vmatprep.subr.mxu0 0.0
        %543 = vmatpush1.xpose.msra.mxu0 0.0
        %544 = vmatprep.subr.mxu0 0.0
        %545 = vmatpush1.xpose.msra.mxu0 0.0
        %546 = vmatprep.subr.mxu0 0.0
        %547 = vmatpush1.xpose.msra.mxu0 0.0
        %548 = vmatprep.subr.mxu0 0.0
        %549 = vmatpush1.xpose.msra.mxu0 0.0
        %550 = vmatprep.mubr.f32.mxu0 0.0
        %551 = vmatmul.mubr.f32.gmra.mrb[0].mxu0 %v433
        %v552 = vpop.f32.mrb[0].mxu0
        %v553 = vadd.f32 0.0, %v552
        %v554 = vpop.f32.mrb[0].mxu0
        %555 = vmatprep.mubr.f32.mxu0 0.0
        %556 = vmatmul.mubr.f32.gmra.mrb[0].mxu0 %v436
        %v557 = vpop.f32.mrb[0].mxu0
        %v558 = vadd.f32 0.0, %v557
        %v559 = vpop.f32.mrb[0].mxu0
        %560 = vdwg.mxu0
        %v562 = vlaneseq
        %v563 = vshrl.u32 %v562, 7
        %v564 = vsub.s32 0, %v563
        %v565 = vrot.slane %v422, %v564
        %v567 = vadd.f32 %v428, %v565
        %v568 = vadd.f32 %v431, %v565
        %v569 = vmul.f32 %v553, 2.0
        %v570 = vmul.f32 %v558, 2.0
        %v571 = vsub.f32 %v567, %v569
        %v572 = vsub.f32 %v568, %v570
        %573 = vst [vmem:[%s301] sm:$0xff] %v571
        %574 = vst [vmem:[%s301 + $0x8] sm:$0xff] %v572
        %575 = vmin.xlane.f32.xlu0 %v571
        %v576 = vpop.xlane.xlu0 %575
        %577 = vmin.xlane.f32.xlu0 %v572
        %v578 = vpop.xlane.xlu0 %577
        %v579 = vlaneseq
        %v580 = vand.u32 %v579, 127
        %vm581 = vcmp.le.f32.partialorder %v571, %v576
        %vm582 = vcmp.le.f32.partialorder %v572, %v578
        %v583 = vsel %vm581, %v580, 128
        %v584 = vsel %vm582, %v580, 128
        %v585 = vand.u32 %v583, 65535
        %v586 = vshra.s32 %v583, 16
        %v587 = vcvt.s32.f32 %v585
        %v588 = vcvt.s32.f32 %v586
        %589 = vmin.xlane.f32.xlu0 %v588
        %v590 = vpop.xlane.xlu0 %589
        %vm591 = vcmp.eq.f32.partialorder %v588, %v590
        %v592 = vsel %vm591, %v587, inf
        %593 = vmin.xlane.f32.xlu0 %v592
        %v594 = vpop.xlane.xlu0 %593
        %v595 = vcvt.f32.s32 %v594
        %v596 = vcvt.f32.s32 %v590
        %v597 = vshll.u32 %v596, 16
        %v598 = vadd.s32 %v597, %v595
        %v599 = vand.u32 %v584, 65535
        %v600 = vshra.s32 %v584, 16
        %v601 = vcvt.s32.f32 %v599
        %v602 = vcvt.s32.f32 %v600
        %603 = vmin.xlane.f32.xlu0 %v602
        %v604 = vpop.xlane.xlu0 %603
        %vm605 = vcmp.eq.f32.partialorder %v602, %v604
        %v606 = vsel %vm605, %v601, inf
        %607 = vmin.xlane.f32.xlu0 %v606
        %v608 = vpop.xlane.xlu0 %607
        %v609 = vcvt.f32.s32 %v608
        %v610 = vcvt.f32.s32 %v604
        %v611 = vshll.u32 %v610, 16
        %v612 = vadd.s32 %v611, %v609
        %vm613 = vcmask 7168
        %614 = vst.msk [vmem:[%s354] sm:$0xff] %vm613, %v598
        %615 = vst.msk [vmem:[%s354 + $0x8] sm:$0xff] %vm613, %v612
        %vm616 = vcmp.eq.s32.totalorder %v580, %v598
        %vm617 = vcmp.eq.s32.totalorder %v580, %v612
        %v618 = vsel %vm616, 1, 0
        %v619 = vsel %vm617, 1, 0
        %v620 = vcvt.s32.f32 %v618
        %v621 = vcvt.s32.f32 %v619
        %622 = vmatprep.subr.mxu0 0.0
        %623 = vmatpush1.msra.mxu0 %v406
        %624 = vmatprep.subr.mxu0 0.0
        %625 = vmatpush1.msra.mxu0 %v407
        %626 = vmatprep.subr.mxu0 0.0
        %627 = vmatpush1.msra.mxu0 %v408
        %628 = vmatprep.subr.mxu0 0.0
        %629 = vmatpush1.msra.mxu0 %v409
        %630 = vmatprep.subr.mxu0 0.0
        %631 = vmatpush1.msra.mxu0 %v410
        %632 = vmatprep.subr.mxu0 0.0
        %633 = vmatpush1.msra.mxu0 %v411
        %634 = vmatprep.subr.mxu0 0.0
        %635 = vmatpush1.msra.mxu0 %v412
        %636 = vmatprep.subr.mxu0 0.0
        %637 = vmatpush1.msra.mxu0 %v413
        %638 = vmatprep.subr.mxu0 0.0
        %639 = vmatpush1.msra.mxu0 %v414
        %640 = vmatprep.subr.mxu0 0.0
        %641 = vmatpush1.msra.mxu0 %v415
        %642 = vmatprep.subr.mxu0 0.0
        %643 = vmatpush1.msra.mxu0 %v416
        %644 = vmatprep.subr.mxu0 0.0
        %645 = vmatpush1.msra.mxu0 %v417
        %646 = vmatprep.subr.mxu0 0.0
        %647 = vmatpush1.msra.mxu0 %v418
        %648 = vmatprep.subr.mxu0 0.0
        %649 = vmatpush1.msra.mxu0 %v419
        %650 = vmatprep.subr.mxu0 0.0
        %651 = vmatpush1.msra.mxu0 %v420
        %652 = vmatprep.subr.mxu0 0.0
        %653 = vmatpush1.msra.mxu0 %v421
        %654 = vmatprep.subr.mxu0 0.0
        %655 = vmatpush1.msra.mxu0 0.0
        %656 = vmatprep.subr.mxu0 0.0
        %657 = vmatpush1.msra.mxu0 0.0
        %658 = vmatprep.subr.mxu0 0.0
        %659 = vmatpush1.msra.mxu0 0.0
        %660 = vmatprep.subr.mxu0 0.0
        %661 = vmatpush1.msra.mxu0 0.0
        %662 = vmatprep.subr.mxu0 0.0
        %663 = vmatpush1.msra.mxu0 0.0
        %664 = vmatprep.subr.mxu0 0.0
        %665 = vmatpush1.msra.mxu0 0.0
        %666 = vmatprep.subr.mxu0 0.0
        %667 = vmatpush1.msra.mxu0 0.0
        %668 = vmatprep.subr.mxu0 0.0
        %669 = vmatpush1.msra.mxu0 0.0
        %670 = vmatprep.subr.mxu0 0.0
        %671 = vmatpush1.msra.mxu0 0.0
        %672 = vmatprep.subr.mxu0 0.0
        %673 = vmatpush1.msra.mxu0 0.0
        %674 = vmatprep.subr.mxu0 0.0
        %675 = vmatpush1.msra.mxu0 0.0
        %676 = vmatprep.subr.mxu0 0.0
        %677 = vmatpush1.msra.mxu0 0.0
        %678 = vmatprep.subr.mxu0 0.0
        %679 = vmatpush1.msra.mxu0 0.0
        %680 = vmatprep.subr.mxu0 0.0
        %681 = vmatpush1.msra.mxu0 0.0
        %682 = vmatprep.subr.mxu0 0.0
        %683 = vmatpush1.msra.mxu0 0.0
        %684 = vmatprep.subr.mxu0 0.0
        %685 = vmatpush1.msra.mxu0 0.0
        %686 = vmatprep.mubr.f32.mxu0 0.0
        %687 = vmatmul.mubr.f32.gmra.mrb[0].mxu0 %v620
        %v688 = vpop.f32.mrb[0].mxu0
        %v689 = vadd.f32 0.0, %v688
        %v690 = vpop.f32.mrb[0].mxu0
        %691 = vmatprep.mubr.f32.mxu0 0.0
        %692 = vmatmul.mubr.f32.gmra.mrb[0].mxu0 %v621
        %v693 = vpop.f32.mrb[0].mxu0
        %v694 = vadd.f32 0.0, %v693
        %v695 = vpop.f32.mrb[0].mxu0
        %696 = vdwg.mxu0
        %697 = vxpose.xlu0.b32.start [1/16] %v689, 128
        %698 = vxpose.xlu0.b32.cont [2/16] %v694, 128
        %699 = vxpose.xlu0.b32.cont [3/16] 0.0, 128
        %700 = vxpose.xlu0.b32.cont [4/16] 0.0, 128
        %701 = vxpose.xlu0.b32.cont [5/16] 0.0, 128
        %702 = vxpose.xlu0.b32.cont [6/16] 0.0, 128
        %703 = vxpose.xlu0.b32.cont [7/16] 0.0, 128
        %704 = vxpose.xlu0.b32.cont [8/16] 0.0, 128
        %705 = vxpose.xlu0.b32.cont [9/16] 0.0, 128
        %706 = vxpose.xlu0.b32.cont [10/16] 0.0, 128
        %707 = vxpose.xlu0.b32.cont [11/16] 0.0, 128
        %708 = vxpose.xlu0.b32.cont [12/16] 0.0, 128
        %709 = vxpose.xlu0.b32.cont [13/16] 0.0, 128
        %710 = vxpose.xlu0.b32.cont [14/16] 0.0, 128
        %711 = vxpose.xlu0.b32.cont [15/16] 0.0, 128
        %712 = vxpose.xlu0.b32.end [16/16] 0.0, 128
        %v713 = vpop.trf.xlu0
        %v714 = vpop.trf.xlu0
        %v715 = vpop.trf.xlu0
        %v716 = vpop.trf.xlu0
        %v717 = vpop.trf.xlu0
        %v718 = vpop.trf.xlu0
        %v719 = vpop.trf.xlu0
        %v720 = vpop.trf.xlu0
        %v721 = vpop.trf.xlu0
        %v722 = vpop.trf.xlu0
        %v723 = vpop.trf.xlu0
        %v724 = vpop.trf.xlu0
        %v725 = vpop.trf.xlu0
        %v726 = vpop.trf.xlu0
        %v727 = vpop.trf.xlu0
        %v728 = vpop.trf.xlu0
        %vm729 = vcmask 130048
        %730 = vst.msk [vmem:[%s363] sm:$0xff] %vm729, %v713
        %731 = vst.msk [vmem:[%s363 + $0x8] sm:$0xff] %vm729, %v714
        %732 = vst.msk [vmem:[%s363 + $0x10] sm:$0xff] %vm729, %v715
        %733 = vst.msk [vmem:[%s363 + $0x18] sm:$0xff] %vm729, %v716
        %v734 = vsub.f32 %v689, %v390
        %v735 = vsub.f32 %v694, %v391
        %v736 = vmul.f32 %v734, %v734
        %v737 = vmul.f32 %v735, %v735
        %v738 = vadd.f32 %v620, %v621
        %v739 = vrot.slane %v738, 4
        %v740 = vadd.f32 %v738, %v739
        %v741 = vrot.slane %v740, 2
        %v742 = vadd.f32 %v740, %v741
        %v743 = vrot.slane %v742, 1
        %v744 = vadd.f32 %v742, %v743
        %v745 = vld [vmem:[%s329] sm:$0xff]
        %v746 = vadd.f32 %v745, %v744
        %747 = vst [vmem:[%s329] sm:$0xff] %v746
        %v748 = vld [vmem:[%s336] sm:$0xff]
        %v749 = vsel %vm425, %v736, 0.0
        %v750 = vsel %vm425, %v737, 0.0
        %v751 = vadd.f32 %v749, %v750
        %752 = vadd.xlane.f32.xlu0 %v751
        %v753 = vpop.xlane.xlu0 %752
        %v754 = vrot.slane %v753, 4
        %v755 = vadd.f32 %v753, %v754
        %v756 = vrot.slane %v755, 2
        %v757 = vadd.f32 %v755, %v756
        %v758 = vrot.slane %v757, 1
        %v759 = vadd.f32 %v757, %v758
        %s760 = vtos %v759
        %v761 = vstv %s760
        %v762 = vadd.f32 %v748, %v761
        %763 = vst [vmem:[%s336] sm:$0xff] %v762
        %s764 = sand.u32 %s117, 1
        %s765 = scalar_lea.sflag [#allocation3], %s764
        %s766 = sand.u32 %s117, 1
        %s767 = smul.addr %s766, 16
        %s768 = scalar_lea.vmem [#allocation2], %s767
        %s769 = smul.u32 2, %s30
        %p770 = scmp.lt.s32.totalorder %s29, 1
        %s771 = scalar_select %p770, %s29, 1
        %p772 = scmp.lt.s32.totalorder %s769, 1
        %s773 = scalar_select %p772, %s769, 1
        %s774 = smul.addr %s771, 2
        %s775 = sadd.s32 %s773, %s774
        %s776 = smul.addr %s775, 8
        %s777 = scalar_lea.vmem %s4, %s776
        %p778 = scmp.lt.s32.totalorder %s29, 1
        %s779 = scalar_select %p778, %s29, 1
        %p780 = scmp.lt.s32.totalorder %s30, 0
        %s781 = scalar_select %p780, %s30, 0
        %s782 = smul.addr %s779, 4
        %s783 = sadd.s32 %s781, %s782
        %s784 = smul.addr %s783, 8
        %s785 = scalar_lea.vmem %s5, %s784
        %s786 = sand.u32 %s25, 1
        %s787 = scalar_lea.sflag [#allocation5], %s786
        %s788 = sand.u32 %s199, 1
        %s789 = smul.addr %s788, 8
        %s790 = scalar_lea.vmem [#allocation4], %s789
        %s791 = sand.u32 %s25, 1
        %s792 = scalar_lea.sflag [#allocation5], %s791
        %s793 = sand.u32 %s225, 1
        %s794 = smul.addr %s793, 8
        %s795 = scalar_lea.vmem [#allocation6], %s794
        // Predicated region
        $region37: #{tpu_custom_call.1} parent=31 // pred_check
          %p796 = pneg %p127
        $region38: #{tpu_custom_call.1} parent=31 // pred_check_branch
          %798 = sbr.rel (%p796) target = $region40
        $region39: #{tpu_custom_call.1} parent=31 // pred_region
          %s799 = smul.u32 2, %s30
          %s801 = ssub.s32 256, 256
          %802 = vsyncadd %s765, %s801
          %s803 = smul.addr %s29, 2
          %s804 = sadd.s32 %s799, %s803
          %s805 = smul.addr %s804, 128
          %s806 = scalar_lea.hbm %s3, %s805
          %s807 = sshll.u32 %s768, 4
          %s808 = int_to_ptr.vmem [resolvable:$true] %s807
          %813 = dma.vmem_to_hbm [thread:$0]  %s808, 256, %s806, %s765, 128, 128, 8
        $region40: #{tpu_custom_call.1} parent=31 // pred_fallthru
          _
        // Predicated region
        $region41: #{tpu_custom_call.1} parent=31 // pred_check
          %p814 = pneg %p155
        $region42: #{tpu_custom_call.1} parent=31 // pred_check_branch
          %816 = sbr.rel (%p814) target = $region44
        $region43: #{tpu_custom_call.1} parent=31 // pred_region
          %s817 = smul.u32 2, %s30
        $region44: #{tpu_custom_call.1} parent=31 // pred_fallthru
          _
        // Predicated region
        $region45: #{tpu_custom_call.1} parent=31 // pred_check
          %p818 = pneg %p183
        $region46: #{tpu_custom_call.1} parent=31 // pred_check_branch
          %820 = sbr.rel (%p818) target = $region48
        $region47: #{tpu_custom_call.1} parent=31 // pred_region
          _
        $region48: #{tpu_custom_call.1} parent=31 // pred_fallthru
          _
        // Predicated region
        $region49: #{tpu_custom_call.1} parent=31 // pred_check
          %p821 = pneg %p209
        $region50: #{tpu_custom_call.1} parent=31 // pred_check_branch
          %823 = sbr.rel (%p821) target = $region52
        $region51: #{tpu_custom_call.1} parent=31 // pred_region
          %s825 = ssub.s32 128, 128
          %826 = vsyncadd %s787, %s825
          %s827 = smul.addr %s29, 128
          %s828 = scalar_lea.hbm %s6, %s827
          %s830 = sshll.u32 %s790, 4
          %s831 = int_to_ptr.vmem [resolvable:$true] %s830
          %833 = dma.vmem_to_hbm [thread:$0]  %s831, 128, %s828, %s787
        $region52: #{tpu_custom_call.1} parent=31 // pred_fallthru
          _
        // Predicated region
        $region53: #{tpu_custom_call.1} parent=31 // pred_check
          %p834 = pneg %p235
        $region54: #{tpu_custom_call.1} parent=31 // pred_check_branch
          %836 = sbr.rel (%p834) target = $region56
        $region55: #{tpu_custom_call.1} parent=31 // pred_region
          %s838 = ssub.s32 128, 128
          %839 = vsyncadd %s792, %s838
          %s840 = smul.addr %s29, 128
          %s841 = scalar_lea.hbm %s7, %s840
          %s843 = sshll.u32 %s795, 4
          %s844 = int_to_ptr.vmem [resolvable:$true] %s843
          %846 = dma.vmem_to_hbm [thread:$0]  %s844, 128, %s841, %s792
        $region56: #{tpu_custom_call.1} parent=31 // pred_fallthru
          _
      $region32: #{tpu_custom_call.1} parent=5 // pred_fallthru
        _
      %p847 = scmp.le.s32.totalorder 2, %s20
      // Predicated region
      $region57: #{tpu_custom_call.1} parent=5 // pred_check
        %p848 = pneg %p847
      $region58: #{tpu_custom_call.1} parent=5 // pred_check_branch
        %850 = sbr.rel (%p848) target = $region60
      $region59: #{tpu_custom_call.1} parent=5 // pred_region
        %s851 = ssub.s32 %s20, 2
        // Predicated region
        $region61: #{tpu_custom_call.1} parent=59 // pred_check
          %p852 = pneg %p133
        $region62: #{tpu_custom_call.1} parent=59 // pred_check_branch
          %854 = sbr.rel (%p852) target = $region64
        $region63: #{tpu_custom_call.1} parent=59 // pred_region
          %s855 = sand.u32 %s118, 1
          %s856 = scalar_lea.sflag [#allocation3], %s855
          %s857 = sand.u32 %s118, 1
          %s858 = smul.addr %s857, 16
          %s859 = scalar_lea.vmem [#allocation2], %s858
          %860 = dma.done %s856, 256
        $region64: #{tpu_custom_call.1} parent=59 // pred_fallthru
          _
        // Predicated region
        $region65: #{tpu_custom_call.1} parent=59 // pred_check
          %p861 = pneg %p161
        $region66: #{tpu_custom_call.1} parent=59 // pred_check_branch
          %863 = sbr.rel (%p861) target = $region68
        $region67: #{tpu_custom_call.1} parent=59 // pred_region
          %s864 = smul.u32 2, %s32
          %p865 = scmp.lt.s32.totalorder %s31, 1
          %s866 = scalar_select %p865, %s31, 1
          %p867 = scmp.lt.s32.totalorder %s864, 1
          %s868 = scalar_select %p867, %s864, 1
          %s869 = smul.addr %s866, 2
          %s870 = sadd.s32 %s868, %s869
          %s871 = smul.addr %s870, 8
          %s872 = scalar_lea.vmem %s4, %s871
        $region68: #{tpu_custom_call.1} parent=59 // pred_fallthru
          _
        // Predicated region
        $region69: #{tpu_custom_call.1} parent=59 // pred_check
          %p873 = pneg %p189
        $region70: #{tpu_custom_call.1} parent=59 // pred_check_branch
          %875 = sbr.rel (%p873) target = $region72
        $region71: #{tpu_custom_call.1} parent=59 // pred_region
          %p876 = scmp.lt.s32.totalorder %s31, 1
          %s877 = scalar_select %p876, %s31, 1
          %p878 = scmp.lt.s32.totalorder %s32, 0
          %s879 = scalar_select %p878, %s32, 0
          %s880 = smul.addr %s877, 4
          %s881 = sadd.s32 %s879, %s880
          %s882 = smul.addr %s881, 8
          %s883 = scalar_lea.vmem %s5, %s882
        $region72: #{tpu_custom_call.1} parent=59 // pred_fallthru
          _
        // Predicated region
        $region73: #{tpu_custom_call.1} parent=59 // pred_check
          %p884 = pneg %p215
        $region74: #{tpu_custom_call.1} parent=59 // pred_check_branch
          %886 = sbr.rel (%p884) target = $region76
        $region75: #{tpu_custom_call.1} parent=59 // pred_region
          %s887 = sand.u32 %s26, 1
          %s888 = scalar_lea.sflag [#allocation5], %s887
          %s889 = sand.u32 %s200, 1
          %s890 = smul.addr %s889, 8
          %s891 = scalar_lea.vmem [#allocation4], %s890
          %892 = dma.done %s888, 128
        $region76: #{tpu_custom_call.1} parent=59 // pred_fallthru
          _
        // Predicated region
        $region77: #{tpu_custom_call.1} parent=59 // pred_check
          %p893 = pneg %p241
        $region78: #{tpu_custom_call.1} parent=59 // pred_check_branch
          %895 = sbr.rel (%p893) target = $region80
        $region79: #{tpu_custom_call.1} parent=59 // pred_region
          %s896 = sand.u32 %s26, 1
          %s897 = scalar_lea.sflag [#allocation5], %s896
          %s898 = sand.u32 %s226, 1
          %s899 = smul.addr %s898, 8
          %s900 = scalar_lea.vmem [#allocation6], %s899
          %901 = dma.done %s897, 128
        $region80: #{tpu_custom_call.1} parent=59 // pred_fallthru
          _
      $region60: #{tpu_custom_call.1} parent=5 // pred_fallthru
        _
    $region6: #{tpu_custom_call.1} parent=1 // loop_footer
      %s24 = sadd.s32 1, %s20
    $region7: #{tpu_custom_call.1} parent=1 // loop_footer_branch
      %19 = sbr.rel target = $region3
    $region8: #{tpu_custom_call.1} parent=1 // loop_exit
      _
    %902 = vsyncpa [#allocation3], 1
    %s903 = scalar_lea.sflag [#allocation3], 1
    %904 = vsyncpa %s903, 1
    %905 = vsyncpa [#allocation5], 1
    %s906 = scalar_lea.sflag [#allocation5], 1
    %907 = vsyncpa %s906, 1

</llo_original>
